<compile_context>
chip_gen: v5e
topology: v5e:2x2
jax: 0.10.0
libtpu: 0.0.40
codegen_flags: <defaults>
</compile_context>

<pallas_src>
import jax
import jax.numpy as jnp
from jax.experimental import pallas as pl
from jax.experimental.pallas import tpu as pltpu

IN_DIM = 64       # encoder.input_dim  (flattened 8x8 board)
LAT_DIM = 32      # encoder.latent_dim
OUT_DIM = 128     # decoder.output_dim

MAX_TILE_M = 2048          # output rows per grid step (encoder sees 2*tile_m rows)
ROW_ALIGN = 16             # bf16 packed-sublane tile height; keeps concat/split aligned
VMEM_LIMIT_BYTES = 48 * 1024 * 1024


def _round_up(x, m):
    return ((x + m - 1) // m) * m


def _autoencoder_kernel(b1_ref, b2_ref,
                        ew0_ref, eb0_ref, ew1_ref, eb1_ref, ew2_ref, eb2_ref,
                        wf_ref, db0_ref, dw1_ref, db1_ref,
                        out_ref):
    """Fused encode(b1 ++ b2) -> diff -> fused-latent decode for one batch tile."""
    tile_m = b1_ref.shape[0]

    def linear(x_bf16, w_ref, b_ref):
        # bf16 operands on the MXU, f32 accumulation, f32 bias add on the VPU.
        return jnp.dot(x_bf16, w_ref[...],
                       preferred_element_type=jnp.float32) + b_ref[...]

    def relu_bf16(y_f32):
        # ReLU in f32 (v5e's VPU has no bf16 ALUs), one pack to bf16 per layer.
        return jnp.maximum(y_f32, 0.0).astype(jnp.bfloat16)

    # Both boards through the shared encoder in one matmul chain; the concat is
    # done on bf16 blocks so the copy is half the old f32 version's traffic.
    x = jnp.concatenate([b1_ref[...].astype(jnp.bfloat16),
                         b2_ref[...].astype(jnp.bfloat16)], axis=0)

    h = relu_bf16(linear(x, ew0_ref, eb0_ref))            # Linear(64, 256) + ReLU
    h = relu_bf16(linear(h, ew1_ref, eb1_ref))            # Linear(256, 128) + ReLU
    h3 = jnp.maximum(linear(h, ew2_ref, eb2_ref), 0.0)    # Linear(128, 64) + ReLU (kept f32)

    # z1 - z2 == (h3_b1 - h3_b2) @ ew3 (eb3 cancels) and there is no
    # nonlinearity between ew3 and dw0, so both are folded into wf = ew3 @ dw0.
    # Subtract in f32 BEFORE the bf16 matmul: halves the rows through the
    # narrowest layer and avoids bf16 cancellation on near-identical boards.
    h_diff = (h3[:tile_m, :] - h3[tile_m:, :]).astype(jnp.bfloat16)

    g = relu_bf16(linear(h_diff, wf_ref, db0_ref))        # fused Linear(64,64) + ReLU
    # TODO(synk): torch's np.squeeze makes z3/output 1-D for batch==1; this
    # kernel always returns (batch, OUT_DIM).
    out_ref[...] = linear(g, dw1_ref, db1_ref).astype(out_ref.dtype)   # Linear(64, 128)


def autoencoder_forward(b1, b2, kparams):
    """kparams is the flat list from pack_kernel_params (kernel argument order)."""
    batch = b1.shape[0]
    assert b1.shape == (batch, IN_DIM) and b2.shape == (batch, IN_DIM)

    # Only pad up to the next ROW_ALIGN multiple (<= 15 rows, usually a no-op);
    # no tile-sized padding — the grid uses cdiv and the partial last block is
    # masked on writeback (rows are independent, so pad rows stay harmless).
    m_al = _round_up(batch, ROW_ALIGN)
    if m_al != batch:
        pad = ((0, m_al - batch), (0, 0))
        b1 = jnp.pad(b1, pad)
        b2 = jnp.pad(b2, pad)

    # >= 2 grid steps whenever the batch allows it so the "parallel" axis can be
    # sharded over both v7x TensorCores; tiles are capped at MAX_TILE_M rows.
    num_tiles = max(1, min(max(2, pl.cdiv(m_al, MAX_TILE_M)), m_al // ROW_ALIGN))
    tile_m = _round_up(pl.cdiv(m_al, num_tiles), ROW_ALIGN)
    grid = (pl.cdiv(m_al, tile_m),)

    board_spec = pl.BlockSpec((tile_m, IN_DIM), lambda i: (i, 0))
    # Full-array blocks with a constant index_map: weights/biases stay
    # VMEM-resident across all batch-grid steps (no re-DMA).
    param_specs = [pl.BlockSpec(p.shape, lambda i: (0, 0)) for p in kparams]
    out_spec = pl.BlockSpec((tile_m, OUT_DIM), lambda i: (i, 0))

    out = pl.pallas_call(
        _autoencoder_kernel,
        out_shape=jax.ShapeDtypeStruct((m_al, OUT_DIM), jnp.float32),
        grid=grid,
        in_specs=[board_spec, board_spec] + param_specs,
        out_specs=out_spec,
        compiler_params=pltpu.CompilerParams(
            dimension_semantics=("parallel",),
            vmem_limit_bytes=VMEM_LIMIT_BYTES),
    )(b1, b2, *kparams)

    action_space = out[:batch] if m_al != batch else out
    assert action_space.shape == (batch, OUT_DIM)
    return action_space


def init_raw_params(key):
    """nn.Linear-style init U(-1/sqrt(fan_in), 1/sqrt(fan_in)), all f32.

    Weights are stored pre-transposed as (fan_in, fan_out); biases as (1, fan_out).
    """
    layer_dims = [
        (IN_DIM, 256), (256, 128), (128, 64), (64, LAT_DIM),   # encoder
        (LAT_DIM, 2 * LAT_DIM), (2 * LAT_DIM, OUT_DIM),        # decoder
    ]
    raw = []
    for fan_in, fan_out in layer_dims:
        key, kw, kb = jax.random.split(key, 3)
        bound = 1.0 / (fan_in ** 0.5)
        raw.append(jax.random.uniform(kw, (fan_in, fan_out), jnp.float32, -bound, bound))
        raw.append(jax.random.uniform(kb, (1, fan_out), jnp.float32, -bound, bound))
    return raw


def pack_kernel_params(raw):
    """f32 module params -> kernel args: bf16 weights, f32 biases, fused latent."""
    ew0, eb0, ew1, eb1, ew2, eb2, ew3, eb3, dw0, db0, dw1, db1 = raw
    del eb3  # cancels exactly in z1 - z2
    # Fold ew3 @ dw0 (no nonlinearity in between); f32 product, single bf16 cast.
    w_fused = (ew3 @ dw0).astype(jnp.bfloat16)
    bf16 = jnp.bfloat16
    return [ew0.astype(bf16), eb0, ew1.astype(bf16), eb1, ew2.astype(bf16), eb2,
            w_fused, db0, dw1.astype(bf16), db1]


def reference_forward(b1, b2, raw_params):
    """Pure-JAX f32 reference mirroring the PyTorch forward (unfused)."""
    ew0, eb0, ew1, eb1, ew2, eb2, ew3, eb3, dw0, db0, dw1, db1 = raw_params

    def enc(x):
        h = jnp.maximum(x @ ew0 + eb0, 0.0)
        h = jnp.maximum(h @ ew1 + eb1, 0.0)
        h = jnp.maximum(h @ ew2 + eb2, 0.0)
        return h @ ew3 + eb3

    z3 = jnp.squeeze(enc(b1) - enc(b2))
    h = jnp.maximum(z3 @ dw0 + db0, 0.0)
    return h @ dw1 + db1


if __name__ == "__main__":
    key = jax.random.PRNGKey(0)
    kp, k1, k2 = jax.random.split(key, 3)

    raw_params = init_raw_params(kp)
    kparams = pack_kernel_params(raw_params)

    batch = 2
    b1 = jax.random.normal(k1, (batch, IN_DIM), jnp.float32)   # flattened 8x8 board
    b2 = jax.random.normal(k2, (batch, IN_DIM), jnp.float32)

    out = jax.block_until_ready(autoencoder_forward(b1, b2, kparams))
    ref = reference_forward(b1, b2, raw_params)

    assert out.shape == (batch, OUT_DIM)
    # bf16 weights + bf16 hidden activations (f32 MXU accumulation) vs. the true
    # f32 reference: expect ~1e-2 error; loose bound for safety.
    max_err = float(jnp.max(jnp.abs(out - ref)))
    assert jnp.allclose(out, ref, atol=1e-1, rtol=1e-1), (
        f"Pallas output mismatch vs reference (max abs err={max_err})")

    print("KERNEL_OK")
</pallas_src>

<mosaic_0001>
module attributes {stable_mosaic.version = 11 : i64} {
  func.func @_autoencoder_kernel(%arg0: i32, %arg1: memref<16x64xf32, #tpu.memory_space<vmem>>, %arg2: memref<16x64xf32, #tpu.memory_space<vmem>>, %arg3: memref<64x256xbf16, #tpu.memory_space<vmem>>, %arg4: memref<1x256xf32, #tpu.memory_space<vmem>>, %arg5: memref<256x128xbf16, #tpu.memory_space<vmem>>, %arg6: memref<1x128xf32, #tpu.memory_space<vmem>>, %arg7: memref<128x64xbf16, #tpu.memory_space<vmem>>, %arg8: memref<1x64xf32, #tpu.memory_space<vmem>>, %arg9: memref<64x64xbf16, #tpu.memory_space<vmem>>, %arg10: memref<1x64xf32, #tpu.memory_space<vmem>>, %arg11: memref<64x128xbf16, #tpu.memory_space<vmem>>, %arg12: memref<1x128xf32, #tpu.memory_space<vmem>>, %arg13: memref<16x128xf32, #tpu.memory_space<vmem>>) attributes {dimension_semantics = [#tpu.dimension_semantics<parallel>], iteration_bounds = array<i64: 1>, scalar_prefetch = 0 : i64, scratch_operands = 0 : i64, tpu.core_type = #tpu.core_type<tc>, window_params = [{transform_indices = @transform_0, window_bounds = array<i64: 16, 64>}, {transform_indices = @transform_1, window_bounds = array<i64: 16, 64>}, {pipeline_mode = #tpu.pipeline_mode<synchronous>, transform_indices = @transform_2, window_bounds = array<i64: 64, 256>}, {pipeline_mode = #tpu.pipeline_mode<synchronous>, transform_indices = @transform_3, window_bounds = array<i64: 1, 256>}, {pipeline_mode = #tpu.pipeline_mode<synchronous>, transform_indices = @transform_4, window_bounds = array<i64: 256, 128>}, {pipeline_mode = #tpu.pipeline_mode<synchronous>, transform_indices = @transform_5, window_bounds = array<i64: 1, 128>}, {pipeline_mode = #tpu.pipeline_mode<synchronous>, transform_indices = @transform_6, window_bounds = array<i64: 128, 64>}, {pipeline_mode = #tpu.pipeline_mode<synchronous>, transform_indices = @transform_7, window_bounds = array<i64: 1, 64>}, {pipeline_mode = #tpu.pipeline_mode<synchronous>, transform_indices = @transform_8, window_bounds = array<i64: 64, 64>}, {pipeline_mode = #tpu.pipeline_mode<synchronous>, transform_indices = @transform_9, window_bounds = array<i64: 1, 64>}, {pipeline_mode = #tpu.pipeline_mode<synchronous>, transform_indices = @transform_10, window_bounds = array<i64: 64, 128>}, {pipeline_mode = #tpu.pipeline_mode<synchronous>, transform_indices = @transform_11, window_bounds = array<i64: 1, 128>}, {transform_indices = @transform_12, window_bounds = array<i64: 16, 128>}]} {
    %c0 = arith.constant 0 : index
    %c0_0 = arith.constant 0 : index
    %0 = vector.load %arg1[%c0, %c0_0] : memref<16x64xf32, #tpu.memory_space<vmem>>, vector<16x64xf32>
    %1 = arith.truncf %0 : vector<16x64xf32> to vector<16x64xbf16>
    %c0_1 = arith.constant 0 : index
    %c0_2 = arith.constant 0 : index
    %2 = vector.load %arg2[%c0_1, %c0_2] : memref<16x64xf32, #tpu.memory_space<vmem>>, vector<16x64xf32>
    %3 = arith.truncf %2 : vector<16x64xf32> to vector<16x64xbf16>
    %4 = tpu.concatenate %1, %3 in 0 : vector<16x64xbf16>, vector<16x64xbf16> -> vector<32x64xbf16>
    %c0_3 = arith.constant 0 : index
    %c0_4 = arith.constant 0 : index
    %5 = vector.load %arg3[%c0_3, %c0_4] : memref<64x256xbf16, #tpu.memory_space<vmem>>, vector<64x256xbf16>
    %cst = arith.constant dense<0.000000e+00> : vector<32x256xf32>
    %6 = tpu.matmul %4, %5, %cst {dimension_numbers = #tpu.dot_dimension_numbers<[1], [0], [0], [1], [0, 0, 1, 1], [], []>} : vector<32x64xbf16>, vector<64x256xbf16>, vector<32x256xf32> -> vector<32x256xf32>
    %c0_5 = arith.constant 0 : index
    %c0_6 = arith.constant 0 : index
    %7 = vector.load %arg4[%c0_5, %c0_6] : memref<1x256xf32, #tpu.memory_space<vmem>>, vector<1x256xf32>
    %8 = vector.broadcast %7 : vector<1x256xf32> to vector<32x256xf32>
    %9 = arith.addf %6, %8 : vector<32x256xf32>
    %cst_7 = arith.constant 0.000000e+00 : f32
    %10 = vector.broadcast %cst_7 : f32 to vector<32x256xf32>
    %11 = arith.maximumf %9, %10 : vector<32x256xf32>
    %12 = arith.truncf %11 : vector<32x256xf32> to vector<32x256xbf16>
    %c0_8 = arith.constant 0 : index
    %c0_9 = arith.constant 0 : index
    %13 = vector.load %arg5[%c0_8, %c0_9] : memref<256x128xbf16, #tpu.memory_space<vmem>>, vector<256x128xbf16>
    %cst_10 = arith.constant dense<0.000000e+00> : vector<32x128xf32>
    %14 = tpu.matmul %12, %13, %cst_10 {dimension_numbers = #tpu.dot_dimension_numbers<[1], [0], [0], [1], [0, 0, 1, 1], [], []>} : vector<32x256xbf16>, vector<256x128xbf16>, vector<32x128xf32> -> vector<32x128xf32>
    %c0_11 = arith.constant 0 : index
    %c0_12 = arith.constant 0 : index
    %15 = vector.load %arg6[%c0_11, %c0_12] : memref<1x128xf32, #tpu.memory_space<vmem>>, vector<1x128xf32>
    %16 = vector.broadcast %15 : vector<1x128xf32> to vector<32x128xf32>
    %17 = arith.addf %14, %16 : vector<32x128xf32>
    %cst_13 = arith.constant 0.000000e+00 : f32
    %18 = vector.broadcast %cst_13 : f32 to vector<32x128xf32>
    %19 = arith.maximumf %17, %18 : vector<32x128xf32>
    %20 = arith.truncf %19 : vector<32x128xf32> to vector<32x128xbf16>
    %c0_14 = arith.constant 0 : index
    %c0_15 = arith.constant 0 : index
    %21 = vector.load %arg7[%c0_14, %c0_15] : memref<128x64xbf16, #tpu.memory_space<vmem>>, vector<128x64xbf16>
    %cst_16 = arith.constant dense<0.000000e+00> : vector<32x64xf32>
    %22 = tpu.matmul %20, %21, %cst_16 {dimension_numbers = #tpu.dot_dimension_numbers<[1], [0], [0], [1], [0, 0, 1, 1], [], []>} : vector<32x128xbf16>, vector<128x64xbf16>, vector<32x64xf32> -> vector<32x64xf32>
    %c0_17 = arith.constant 0 : index
    %c0_18 = arith.constant 0 : index
    %23 = vector.load %arg8[%c0_17, %c0_18] : memref<1x64xf32, #tpu.memory_space<vmem>>, vector<1x64xf32>
    %24 = vector.broadcast %23 : vector<1x64xf32> to vector<32x64xf32>
    %25 = arith.addf %22, %24 : vector<32x64xf32>
    %cst_19 = arith.constant 0.000000e+00 : f32
    %26 = vector.broadcast %cst_19 : f32 to vector<32x64xf32>
    %27 = arith.maximumf %25, %26 : vector<32x64xf32>
    %28 = vector.extract_strided_slice %27 {offsets = [0, 0], sizes = [16, 64], strides = [1, 1]} : vector<32x64xf32> to vector<16x64xf32>
    %29 = vector.extract_strided_slice %27 {offsets = [16, 0], sizes = [16, 64], strides = [1, 1]} : vector<32x64xf32> to vector<16x64xf32>
    %30 = arith.subf %28, %29 : vector<16x64xf32>
    %31 = arith.truncf %30 : vector<16x64xf32> to vector<16x64xbf16>
    %c0_20 = arith.constant 0 : index
    %c0_21 = arith.constant 0 : index
    %32 = vector.load %arg9[%c0_20, %c0_21] : memref<64x64xbf16, #tpu.memory_space<vmem>>, vector<64x64xbf16>
    %cst_22 = arith.constant dense<0.000000e+00> : vector<16x64xf32>
    %33 = tpu.matmul %31, %32, %cst_22 {dimension_numbers = #tpu.dot_dimension_numbers<[1], [0], [0], [1], [0, 0, 1, 1], [], []>} : vector<16x64xbf16>, vector<64x64xbf16>, vector<16x64xf32> -> vector<16x64xf32>
    %c0_23 = arith.constant 0 : index
    %c0_24 = arith.constant 0 : index
    %34 = vector.load %arg10[%c0_23, %c0_24] : memref<1x64xf32, #tpu.memory_space<vmem>>, vector<1x64xf32>
    %35 = vector.broadcast %34 : vector<1x64xf32> to vector<16x64xf32>
    %36 = arith.addf %33, %35 : vector<16x64xf32>
    %cst_25 = arith.constant 0.000000e+00 : f32
    %37 = vector.broadcast %cst_25 : f32 to vector<16x64xf32>
    %38 = arith.maximumf %36, %37 : vector<16x64xf32>
    %39 = arith.truncf %38 : vector<16x64xf32> to vector<16x64xbf16>
    %c0_26 = arith.constant 0 : index
    %c0_27 = arith.constant 0 : index
    %40 = vector.load %arg11[%c0_26, %c0_27] : memref<64x128xbf16, #tpu.memory_space<vmem>>, vector<64x128xbf16>
    %cst_28 = arith.constant dense<0.000000e+00> : vector<16x128xf32>
    %41 = tpu.matmul %39, %40, %cst_28 {dimension_numbers = #tpu.dot_dimension_numbers<[1], [0], [0], [1], [0, 0, 1, 1], [], []>} : vector<16x64xbf16>, vector<64x128xbf16>, vector<16x128xf32> -> vector<16x128xf32>
    %c0_29 = arith.constant 0 : index
    %c0_30 = arith.constant 0 : index
    %42 = vector.load %arg12[%c0_29, %c0_30] : memref<1x128xf32, #tpu.memory_space<vmem>>, vector<1x128xf32>
    %43 = vector.broadcast %42 : vector<1x128xf32> to vector<16x128xf32>
    %44 = arith.addf %41, %43 : vector<16x128xf32>
    %c0_31 = arith.constant 0 : index
    %c0_32 = arith.constant 0 : index
    %45 = vector.load %arg13[%c0_31, %c0_32] : memref<16x128xf32, #tpu.memory_space<vmem>>, vector<16x128xf32>
    tpu.vector_store %arg13[%c0_31, %c0_32], %44 {strides = array<i32>} : memref<16x128xf32, #tpu.memory_space<vmem>>, vector<16x128xf32>,
    return
  }
  func.func @transform_0(%arg0: i32) -> (i32, i32) {
    %c0_i32 = arith.constant 0 : i32
    %c0_i32_0 = arith.constant 0 : i32
    return %arg0, %c0_i32 : i32, i32
  }
  func.func @transform_1(%arg0: i32) -> (i32, i32) {
    %c0_i32 = arith.constant 0 : i32
    %c0_i32_0 = arith.constant 0 : i32
    return %arg0, %c0_i32 : i32, i32
  }
  func.func @transform_2(%arg0: i32) -> (i32, i32) {
    %c0_i32 = arith.constant 0 : i32
    %c0_i32_0 = arith.constant 0 : i32
    %c0_i32_1 = arith.constant 0 : i32
    return %c0_i32, %c0_i32_0 : i32, i32
  }
  func.func @transform_3(%arg0: i32) -> (i32, i32) {
    %c0_i32 = arith.constant 0 : i32
    %c0_i32_0 = arith.constant 0 : i32
    %c0_i32_1 = arith.constant 0 : i32
    return %c0_i32, %c0_i32_0 : i32, i32
  }
  func.func @transform_4(%arg0: i32) -> (i32, i32) {
    %c0_i32 = arith.constant 0 : i32
    %c0_i32_0 = arith.constant 0 : i32
    %c0_i32_1 = arith.constant 0 : i32
    return %c0_i32, %c0_i32_0 : i32, i32
  }
  func.func @transform_5(%arg0: i32) -> (i32, i32) {
    %c0_i32 = arith.constant 0 : i32
    %c0_i32_0 = arith.constant 0 : i32
    %c0_i32_1 = arith.constant 0 : i32
    return %c0_i32, %c0_i32_0 : i32, i32
  }
  func.func @transform_6(%arg0: i32) -> (i32, i32) {
    %c0_i32 = arith.constant 0 : i32
    %c0_i32_0 = arith.constant 0 : i32
    %c0_i32_1 = arith.constant 0 : i32
    return %c0_i32, %c0_i32_0 : i32, i32
  }
  func.func @transform_7(%arg0: i32) -> (i32, i32) {
    %c0_i32 = arith.constant 0 : i32
    %c0_i32_0 = arith.constant 0 : i32
    %c0_i32_1 = arith.constant 0 : i32
    return %c0_i32, %c0_i32_0 : i32, i32
  }
  func.func @transform_8(%arg0: i32) -> (i32, i32) {
    %c0_i32 = arith.constant 0 : i32
    %c0_i32_0 = arith.constant 0 : i32
    %c0_i32_1 = arith.constant 0 : i32
    return %c0_i32, %c0_i32_0 : i32, i32
  }
  func.func @transform_9(%arg0: i32) -> (i32, i32) {
    %c0_i32 = arith.constant 0 : i32
    %c0_i32_0 = arith.constant 0 : i32
    %c0_i32_1 = arith.constant 0 : i32
    return %c0_i32, %c0_i32_0 : i32, i32
  }
  func.func @transform_10(%arg0: i32) -> (i32, i32) {
    %c0_i32 = arith.constant 0 : i32
    %c0_i32_0 = arith.constant 0 : i32
    %c0_i32_1 = arith.constant 0 : i32
    return %c0_i32, %c0_i32_0 : i32, i32
  }
  func.func @transform_11(%arg0: i32) -> (i32, i32) {
    %c0_i32 = arith.constant 0 : i32
    %c0_i32_0 = arith.constant 0 : i32
    %c0_i32_1 = arith.constant 0 : i32
    return %c0_i32, %c0_i32_0 : i32, i32
  }
  func.func @transform_12(%arg0: i32) -> (i32, i32) {
    %c0_i32 = arith.constant 0 : i32
    %c0_i32_0 = arith.constant 0 : i32
    return %arg0, %c0_i32 : i32, i32
  }
}

</mosaic_0001>

<llo_original>
// kernel: tpu_custom_call.1
$region0: #{tpu_custom_call.1}
  #allocation0 [shape = 'u32[]', space=smem, size = 0x4, offset = 0x4, fixed_abs, tag = 'smem constant byte address 0x4 - core index']
  #allocation1 [shape = 'u32[72,128]{1,0:T(1,128)}', space=vmem, size = 0x9000, scoped, tag = 'internal scratch']
  %s0 = inlined_call_operand.hbm [shape: f32[16,64], index: 0, kind: input, shape index: {}]
  %s1 = inlined_call_operand.hbm [shape: f32[16,64], index: 1, kind: input, shape index: {}]
  %s2 = inlined_call_operand.vmem [shape: bf16[64,256], index: 2, kind: input, shape index: {}]
  %s3 = inlined_call_operand.hbm [shape: f32[1,256], index: 3, kind: input, shape index: {}]
  %s4 = inlined_call_operand.hbm [shape: bf16[256,128], index: 4, kind: input, shape index: {}]
  %s5 = inlined_call_operand.vmem [shape: f32[1,128], index: 5, kind: input, shape index: {}]
  %s6 = inlined_call_operand.vmem [shape: bf16[128,64], index: 6, kind: input, shape index: {}]
  %s7 = inlined_call_operand.vmem [shape: f32[1,64], index: 7, kind: input, shape index: {}]
  %s8 = inlined_call_operand.vmem [shape: bf16[64,64], index: 8, kind: input, shape index: {}]
  %s9 = inlined_call_operand.vmem [shape: f32[1,64], index: 9, kind: input, shape index: {}]
  %s10 = inlined_call_operand.hbm [shape: bf16[64,128], index: 10, kind: input, shape index: {}]
  %s11 = inlined_call_operand.vmem [shape: f32[1,128], index: 11, kind: input, shape index: {}]
  %s12 = inlined_call_operand.hbm [shape: f32[16,128], index: 12, kind: output, shape index: {}]
  %s13 = sld [smem:[#allocation0]]
  $region78: #{tpu_custom_call.1} parent=0
    _
  %s15 = ssub.s32 1, %s13
  %s16 = scalar_select 0, %s15, %s13
  $region1: #{tpu_custom_call.1} parent=0
    #allocation2 [shape = 'u8[8192]{0}', space=vmem, size = 0x2000, scoped, tag = 'input window, operand 0, single buffered']
    #allocation3 [shape = 's32[1]{0}', space=sflag, size = 0x4, scoped, tag = 'scoped memory for tpu_custom_call.1']
    #allocation4 [shape = 's32[1]{0}', space=sflag, size = 0x4, scoped, tag = 'scoped memory for tpu_custom_call.1']
    #allocation5 [shape = 'u8[8192]{0}', space=vmem, size = 0x2000, scoped, tag = 'input window, operand 1, single buffered']
    #allocation6 [shape = 's32[1]{0}', space=sflag, size = 0x4, scoped, tag = 'scoped memory for tpu_custom_call.1']
    #allocation7 [shape = 'u8[1024]{0}', space=vmem, size = 0x400, scoped, tag = 'input window, operand 3, single buffered']
    #allocation8 [shape = 'u8[65536]{0}', space=vmem, size = 0x10000, scoped, tag = 'input window, operand 4, single buffered']
    #allocation9 [shape = 's32[1]{0}', space=sflag, size = 0x4, scoped, tag = 'scoped memory for tpu_custom_call.1']
    #allocation10 [shape = 'u8[16384]{0}', space=vmem, size = 0x4000, scoped, tag = 'input window, operand 10, single buffered']
    #allocation11 [shape = 'u8[8192]{0}', space=vmem, size = 0x2000, scoped, tag = 'output window, operand 0, single buffered']
    %17 = vsyncpa [#allocation3], 0
    %18 = vsyncpa [#allocation6], 0
    %19 = vsyncpa [#allocation9], 0
    %20 = vsyncpa [#allocation4], 0
    // Predicated region
    $region2: #{tpu_custom_call.1} parent=1 // pred_check
      _
    $region3: #{tpu_custom_call.1} parent=1 // pred_check_branch
      %22 = sbr.rel (0) target = $region5
    $region4: #{tpu_custom_call.1} parent=1 // pred_region
      %24 = vsyncadd [#allocation3], 0
      %s25 = sshll.u32 %s0, 4
      %s26 = int_to_ptr.hbm [resolvable:$true] %s25
      %s27 = sshll.u32 [#allocation2], 4
      %s28 = int_to_ptr.vmem [resolvable:$true] %s27
      %33 = dma.hbm_to_vmem [thread:$0]  %s26, 256, %s28, [#allocation3], 128, 128, 8
    $region5: #{tpu_custom_call.1} parent=1 // pred_fallthru
      _
    // Predicated region
    $region6: #{tpu_custom_call.1} parent=1 // pred_check
      _
    $region7: #{tpu_custom_call.1} parent=1 // pred_check_branch
      %35 = sbr.rel (0) target = $region9
    $region8: #{tpu_custom_call.1} parent=1 // pred_region
      %37 = vsyncadd [#allocation6], 0
      %s38 = sshll.u32 %s1, 4
      %s39 = int_to_ptr.hbm [resolvable:$true] %s38
      %s40 = sshll.u32 [#allocation5], 4
      %s41 = int_to_ptr.vmem [resolvable:$true] %s40
      %46 = dma.hbm_to_vmem [thread:$0]  %s39, 256, %s41, [#allocation6], 128, 128, 8
    $region9: #{tpu_custom_call.1} parent=1 // pred_fallthru
      _
    // Predicated region
    $region10: #{tpu_custom_call.1} parent=1 // pred_check
      _
    $region11: #{tpu_custom_call.1} parent=1 // pred_check_branch
      %48 = sbr.rel (0) target = $region13
    $region12: #{tpu_custom_call.1} parent=1 // pred_region
      _
    $region13: #{tpu_custom_call.1} parent=1 // pred_fallthru
      _
    // Predicated region
    $region14: #{tpu_custom_call.1} parent=1 // pred_check
      _
    $region15: #{tpu_custom_call.1} parent=1 // pred_check_branch
      %50 = sbr.rel (0) target = $region17
    $region16: #{tpu_custom_call.1} parent=1 // pred_region
      %52 = vsyncadd [#allocation6], 0
      %s54 = sshll.u32 %s3, 4
      %s55 = int_to_ptr.hbm [resolvable:$true] %s54
      %s56 = sshll.u32 [#allocation7], 4
      %s57 = int_to_ptr.vmem [resolvable:$true] %s56
      %59 = dma.hbm_to_vmem [thread:$0]  %s55, 32, %s57, [#allocation6]
    $region17: #{tpu_custom_call.1} parent=1 // pred_fallthru
      _
    // Predicated region
    $region18: #{tpu_custom_call.1} parent=1 // pred_check
      _
    $region19: #{tpu_custom_call.1} parent=1 // pred_check_branch
      %61 = sbr.rel (0) target = $region21
    $region20: #{tpu_custom_call.1} parent=1 // pred_region
      %63 = vsyncadd [#allocation9], 0
      %s64 = sshll.u32 %s4, 4
      %s65 = int_to_ptr.hbm [resolvable:$true] %s64
      %s66 = sshll.u32 [#allocation8], 4
      %s67 = int_to_ptr.vmem [resolvable:$true] %s66
      %72 = dma.hbm_to_vmem [thread:$0]  %s65, 2048, %s67, [#allocation9], 64, 64, 4
    $region21: #{tpu_custom_call.1} parent=1 // pred_fallthru
      _
    // Predicated region
    $region22: #{tpu_custom_call.1} parent=1 // pred_check
      _
    $region23: #{tpu_custom_call.1} parent=1 // pred_check_branch
      %74 = sbr.rel (0) target = $region25
    $region24: #{tpu_custom_call.1} parent=1 // pred_region
      _
    $region25: #{tpu_custom_call.1} parent=1 // pred_fallthru
      _
    // Predicated region
    $region26: #{tpu_custom_call.1} parent=1 // pred_check
      _
    $region27: #{tpu_custom_call.1} parent=1 // pred_check_branch
      %76 = sbr.rel (0) target = $region29
    $region28: #{tpu_custom_call.1} parent=1 // pred_region
      _
    $region29: #{tpu_custom_call.1} parent=1 // pred_fallthru
      _
    // Predicated region
    $region30: #{tpu_custom_call.1} parent=1 // pred_check
      _
    $region31: #{tpu_custom_call.1} parent=1 // pred_check_branch
      %78 = sbr.rel (0) target = $region33
    $region32: #{tpu_custom_call.1} parent=1 // pred_region
      _
    $region33: #{tpu_custom_call.1} parent=1 // pred_fallthru
      _
    // Predicated region
    $region34: #{tpu_custom_call.1} parent=1 // pred_check
      _
    $region35: #{tpu_custom_call.1} parent=1 // pred_check_branch
      %80 = sbr.rel (0) target = $region37
    $region36: #{tpu_custom_call.1} parent=1 // pred_region
      _
    $region37: #{tpu_custom_call.1} parent=1 // pred_fallthru
      _
    // Predicated region
    $region38: #{tpu_custom_call.1} parent=1 // pred_check
      _
    $region39: #{tpu_custom_call.1} parent=1 // pred_check_branch
      %82 = sbr.rel (0) target = $region41
    $region40: #{tpu_custom_call.1} parent=1 // pred_region
      _
    $region41: #{tpu_custom_call.1} parent=1 // pred_fallthru
      _
    // Predicated region
    $region42: #{tpu_custom_call.1} parent=1 // pred_check
      _
    $region43: #{tpu_custom_call.1} parent=1 // pred_check_branch
      %84 = sbr.rel (0) target = $region45
    $region44: #{tpu_custom_call.1} parent=1 // pred_region
      %86 = vsyncadd [#allocation9], 0
      %s87 = sshll.u32 %s10, 4
      %s88 = int_to_ptr.hbm [resolvable:$true] %s87
      %s89 = sshll.u32 [#allocation10], 4
      %s90 = int_to_ptr.vmem [resolvable:$true] %s89
      %95 = dma.hbm_to_vmem [thread:$0]  %s88, 512, %s90, [#allocation9], 64, 64, 4
    $region45: #{tpu_custom_call.1} parent=1 // pred_fallthru
      _
    // Predicated region
    $region46: #{tpu_custom_call.1} parent=1 // pred_check
      _
    $region47: #{tpu_custom_call.1} parent=1 // pred_check_branch
      %97 = sbr.rel (0) target = $region49
    $region48: #{tpu_custom_call.1} parent=1 // pred_region
      _
    $region49: #{tpu_custom_call.1} parent=1 // pred_fallthru
      _
    // Predicated region
    $region50: #{tpu_custom_call.1} parent=1 // pred_check
      _
    $region51: #{tpu_custom_call.1} parent=1 // pred_check_branch
      %99 = sbr.rel (0) target = $region53
    $region52: #{tpu_custom_call.1} parent=1 // pred_region
      %101 = dma.done [#allocation3], 256
    $region53: #{tpu_custom_call.1} parent=1 // pred_fallthru
      _
    // Predicated region
    $region54: #{tpu_custom_call.1} parent=1 // pred_check
      _
    $region55: #{tpu_custom_call.1} parent=1 // pred_check_branch
      %103 = sbr.rel (0) target = $region57
    $region56: #{tpu_custom_call.1} parent=1 // pred_region
      %105 = dma.done [#allocation6], 256
    $region57: #{tpu_custom_call.1} parent=1 // pred_fallthru
      _
    // Predicated region
    $region58: #{tpu_custom_call.1} parent=1 // pred_check
      _
    $region59: #{tpu_custom_call.1} parent=1 // pred_check_branch
      %107 = sbr.rel (0) target = $region61
    $region60: #{tpu_custom_call.1} parent=1 // pred_region
      %109 = dma.done [#allocation6], 32
    $region61: #{tpu_custom_call.1} parent=1 // pred_fallthru
      _
    // Predicated region
    $region62: #{tpu_custom_call.1} parent=1 // pred_check
      _
    $region63: #{tpu_custom_call.1} parent=1 // pred_check_branch
      %111 = sbr.rel (0) target = $region65
    $region64: #{tpu_custom_call.1} parent=1 // pred_region
      %113 = dma.done [#allocation9], 2048
    $region65: #{tpu_custom_call.1} parent=1 // pred_fallthru
      _
    // Predicated region
    $region66: #{tpu_custom_call.1} parent=1 // pred_check
      _
    $region67: #{tpu_custom_call.1} parent=1 // pred_check_branch
      %115 = sbr.rel (0) target = $region69
    $region68: #{tpu_custom_call.1} parent=1 // pred_region
      %117 = dma.done [#allocation9], 512
    $region69: #{tpu_custom_call.1} parent=1 // pred_fallthru
      _
    %v119 = vld [vmem:[#allocation2] sm:$0xff]
    %v120 = vld [vmem:[#allocation2 + $0x8] sm:$0xff]
    %v121 = vpack.c.bf16 %v119, %v119
    %v122 = vpack.c.bf16 %v120, %v120
    %v123 = vld [vmem:[#allocation5] sm:$0xff]
    %v124 = vld [vmem:[#allocation5 + $0x8] sm:$0xff]
    %v125 = vpack.c.bf16 %v123, %v123
    %v126 = vpack.c.bf16 %v124, %v124
    %v129 = vunpack.c.l.b16 %v121
    %v130 = vunpack.c.l.b16 %v122
    %v131 = vpack.c.b16 %v130, %v129
    %v134 = vunpack.c.l.b16 %v125
    %v135 = vunpack.c.l.b16 %v126
    %v136 = vpack.c.b16 %v135, %v134
    %v137 = vld [vmem:[%s2] sm:$0xff]
    %v138 = vld [vmem:[%s2 + $0x8] sm:$0xff]
    %v139 = vld [vmem:[%s2 + $0x10] sm:$0xff]
    %v140 = vld [vmem:[%s2 + $0x18] sm:$0xff]
    %v141 = vld [vmem:[%s2 + $0x20] sm:$0xff]
    %v142 = vld [vmem:[%s2 + $0x28] sm:$0xff]
    %v143 = vld [vmem:[%s2 + $0x30] sm:$0xff]
    %v144 = vld [vmem:[%s2 + $0x38] sm:$0xff]
    %v145 = vld [vmem:[#allocation7] sm:$0x3]
    %v147 = vperm.slane %v145, 0
    %v148 = vperm.slane %v145, 1
    %v159 = vunpack.c.l.b16 %v137
    %v160 = vunpack.c.h.b16 %v137
    %v161 = vunpack.c.l.b16 %v138
    %v162 = vunpack.c.h.b16 %v138
    %v163 = vunpack.c.l.b16 %v139
    %v164 = vunpack.c.h.b16 %v139
    %v165 = vunpack.c.l.b16 %v140
    %v166 = vunpack.c.h.b16 %v140
    %v167 = vunpack.c.l.b16 %v141
    %v168 = vunpack.c.h.b16 %v141
    %v169 = vunpack.c.l.b16 %v142
    %v170 = vunpack.c.h.b16 %v142
    %v171 = vunpack.c.l.b16 %v143
    %v172 = vunpack.c.h.b16 %v143
    %v173 = vunpack.c.l.b16 %v144
    %v174 = vunpack.c.h.b16 %v144
    %v175 = vpack.c.b16 %v161, %v159
    %v176 = vpack.c.b16 %v162, %v160
    %v177 = vpack.c.b16 %v165, %v163
    %v178 = vpack.c.b16 %v166, %v164
    %v179 = vpack.c.b16 %v169, %v167
    %v180 = vpack.c.b16 %v170, %v168
    %v181 = vpack.c.b16 %v173, %v171
    %v182 = vpack.c.b16 %v174, %v172
    %vm191 = vcmask 523264
    %v193 = vsel %vm191, %v131, 0
    %v196 = vsel %vm191, %v136, 0
    %198 = vmatpush.bf16.msra.mxu0 0
    %199 = vmatpush.bf16.msra.mxu0 0
    %200 = vmatpush.bf16.msra.mxu0 0
    %201 = vmatpush.bf16.msra.mxu0 0
    %202 = vmatpush.bf16.msra.mxu0 %v181
    %203 = vmatpush.bf16.msra.mxu0 %v179
    %204 = vmatpush.bf16.msra.mxu0 %v177
    %205 = vmatpush.bf16.msra.mxu0 %v175
    %206 = vmatmul.bf16.gmra.mxu0 %v193
    %v207 = vpop.f32.mrf.mxu0
    %v208 = vadd.f32 %v147, %v207
    %v209 = vpop.f32.mrf.mxu0
    %v210 = vadd.f32 %v147, %v209
    %211 = vmatmul.bf16.gmra.mxu0 %v196
    %v212 = vpop.f32.mrf.mxu0
    %v213 = vadd.f32 %v147, %v212
    %v214 = vpop.f32.mrf.mxu0
    %v215 = vadd.f32 %v147, %v214
    %216 = vdwg.mxu0
    %217 = vmatpush.bf16.msra.mxu0 0
    %218 = vmatpush.bf16.msra.mxu0 0
    %219 = vmatpush.bf16.msra.mxu0 0
    %220 = vmatpush.bf16.msra.mxu0 0
    %221 = vmatpush.bf16.msra.mxu0 %v182
    %222 = vmatpush.bf16.msra.mxu0 %v180
    %223 = vmatpush.bf16.msra.mxu0 %v178
    %224 = vmatpush.bf16.msra.mxu0 %v176
    %225 = vmatmul.bf16.gmra.mxu0 %v193
    %v226 = vpop.f32.mrf.mxu0
    %v227 = vadd.f32 %v148, %v226
    %v228 = vpop.f32.mrf.mxu0
    %v229 = vadd.f32 %v148, %v228
    %230 = vmatmul.bf16.gmra.mxu0 %v196
    %v231 = vpop.f32.mrf.mxu0
    %v232 = vadd.f32 %v148, %v231
    %v233 = vpop.f32.mrf.mxu0
    %v234 = vadd.f32 %v148, %v233
    %235 = vdwg.mxu0
    %v236 = vmax.f32 %v208, 0.0
    %v237 = vmax.f32 %v227, 0.0
    %v238 = vmax.f32 %v210, 0.0
    %v239 = vmax.f32 %v229, 0.0
    %v240 = vmax.f32 %v213, 0.0
    %v241 = vmax.f32 %v232, 0.0
    %v242 = vmax.f32 %v215, 0.0
    %v243 = vmax.f32 %v234, 0.0
    %v244 = vpack.c.bf16 %v238, %v236
    %v245 = vpack.c.bf16 %v239, %v237
    %v246 = vpack.c.bf16 %v242, %v240
    %v247 = vpack.c.bf16 %v243, %v241
    %v248 = vld [vmem:[#allocation8] sm:$0xf]
    %v249 = vld [vmem:[#allocation8 + $0x4] sm:$0xf]
    %v250 = vld [vmem:[#allocation8 + $0x8] sm:$0xf]
    %v251 = vld [vmem:[#allocation8 + $0xc] sm:$0xf]
    %v252 = vld [vmem:[#allocation8 + $0x10] sm:$0xf]
    %v253 = vld [vmem:[#allocation8 + $0x14] sm:$0xf]
    %v254 = vld [vmem:[#allocation8 + $0x18] sm:$0xf]
    %v255 = vld [vmem:[#allocation8 + $0x1c] sm:$0xf]
    %v256 = vld [vmem:[#allocation8 + $0x20] sm:$0xf]
    %v257 = vld [vmem:[#allocation8 + $0x24] sm:$0xf]
    %v258 = vld [vmem:[#allocation8 + $0x28] sm:$0xf]
    %v259 = vld [vmem:[#allocation8 + $0x2c] sm:$0xf]
    %v260 = vld [vmem:[#allocation8 + $0x30] sm:$0xf]
    %v261 = vld [vmem:[#allocation8 + $0x34] sm:$0xf]
    %v262 = vld [vmem:[#allocation8 + $0x38] sm:$0xf]
    %v263 = vld [vmem:[#allocation8 + $0x3c] sm:$0xf]
    %v264 = vld [vmem:[#allocation8 + $0x40] sm:$0xf]
    %v265 = vld [vmem:[#allocation8 + $0x44] sm:$0xf]
    %v266 = vld [vmem:[#allocation8 + $0x48] sm:$0xf]
    %v267 = vld [vmem:[#allocation8 + $0x4c] sm:$0xf]
    %v268 = vld [vmem:[#allocation8 + $0x50] sm:$0xf]
    %v269 = vld [vmem:[#allocation8 + $0x54] sm:$0xf]
    %v270 = vld [vmem:[#allocation8 + $0x58] sm:$0xf]
    %v271 = vld [vmem:[#allocation8 + $0x5c] sm:$0xf]
    %v272 = vld [vmem:[#allocation8 + $0x60] sm:$0xf]
    %v273 = vld [vmem:[#allocation8 + $0x64] sm:$0xf]
    %v274 = vld [vmem:[#allocation8 + $0x68] sm:$0xf]
    %v275 = vld [vmem:[#allocation8 + $0x6c] sm:$0xf]
    %v276 = vld [vmem:[#allocation8 + $0x70] sm:$0xf]
    %v277 = vld [vmem:[#allocation8 + $0x74] sm:$0xf]
    %v278 = vld [vmem:[#allocation8 + $0x78] sm:$0xf]
    %v279 = vld [vmem:[#allocation8 + $0x7c] sm:$0xf]
    %v280 = vld [vmem:[%s5] sm:$0x1]
    %v282 = vperm.slane %v280, 0
    %v316 = vunpack.c.l.b16 %v248
    %v317 = vunpack.c.l.b16 %v249
    %v318 = vunpack.c.l.b16 %v250
    %v319 = vunpack.c.l.b16 %v251
    %v320 = vunpack.c.l.b16 %v252
    %v321 = vunpack.c.l.b16 %v253
    %v322 = vunpack.c.l.b16 %v254
    %v323 = vunpack.c.l.b16 %v255
    %v324 = vunpack.c.l.b16 %v256
    %v325 = vunpack.c.l.b16 %v257
    %v326 = vunpack.c.l.b16 %v258
    %v327 = vunpack.c.l.b16 %v259
    %v328 = vunpack.c.l.b16 %v260
    %v329 = vunpack.c.l.b16 %v261
    %v330 = vunpack.c.l.b16 %v262
    %v331 = vunpack.c.l.b16 %v263
    %v332 = vunpack.c.l.b16 %v264
    %v333 = vunpack.c.l.b16 %v265
    %v334 = vunpack.c.l.b16 %v266
    %v335 = vunpack.c.l.b16 %v267
    %v336 = vunpack.c.l.b16 %v268
    %v337 = vunpack.c.l.b16 %v269
    %v338 = vunpack.c.l.b16 %v270
    %v339 = vunpack.c.l.b16 %v271
    %v340 = vunpack.c.l.b16 %v272
    %v341 = vunpack.c.l.b16 %v273
    %v342 = vunpack.c.l.b16 %v274
    %v343 = vunpack.c.l.b16 %v275
    %v344 = vunpack.c.l.b16 %v276
    %v345 = vunpack.c.l.b16 %v277
    %v346 = vunpack.c.l.b16 %v278
    %v347 = vunpack.c.l.b16 %v279
    %v348 = vpack.c.b16 %v317, %v316
    %v349 = vpack.c.b16 %v319, %v318
    %v350 = vpack.c.b16 %v321, %v320
    %v351 = vpack.c.b16 %v323, %v322
    %v352 = vpack.c.b16 %v325, %v324
    %v353 = vpack.c.b16 %v327, %v326
    %v354 = vpack.c.b16 %v329, %v328
    %v355 = vpack.c.b16 %v331, %v330
    %v356 = vpack.c.b16 %v333, %v332
    %v357 = vpack.c.b16 %v335, %v334
    %v358 = vpack.c.b16 %v337, %v336
    %v359 = vpack.c.b16 %v339, %v338
    %v360 = vpack.c.b16 %v341, %v340
    %v361 = vpack.c.b16 %v343, %v342
    %v362 = vpack.c.b16 %v345, %v344
    %v363 = vpack.c.b16 %v347, %v346
    %380 = vmatpush.bf16.msra.mxu0 %v355
    %381 = vmatpush.bf16.msra.mxu0 %v354
    %382 = vmatpush.bf16.msra.mxu0 %v353
    %383 = vmatpush.bf16.msra.mxu0 %v352
    %384 = vmatpush.bf16.msra.mxu0 %v351
    %385 = vmatpush.bf16.msra.mxu0 %v350
    %386 = vmatpush.bf16.msra.mxu0 %v349
    %387 = vmatpush.bf16.msra.mxu0 %v348
    %388 = vmatmul.bf16.gmra.mxu0 %v244
    %v389 = vpop.f32.mrf.mxu0
    %v390 = vadd.f32 %v282, %v389
    %v391 = vpop.f32.mrf.mxu0
    %v392 = vadd.f32 %v282, %v391
    %393 = vmatmul.bf16.gmra.mxu0 %v246
    %v394 = vpop.f32.mrf.mxu0
    %v395 = vadd.f32 %v282, %v394
    %v396 = vpop.f32.mrf.mxu0
    %v397 = vadd.f32 %v282, %v396
    %398 = vdwg.mxu0
    %399 = vmatpush.bf16.msra.mxu0 %v363
    %400 = vmatpush.bf16.msra.mxu0 %v362
    %401 = vmatpush.bf16.msra.mxu0 %v361
    %402 = vmatpush.bf16.msra.mxu0 %v360
    %403 = vmatpush.bf16.msra.mxu0 %v359
    %404 = vmatpush.bf16.msra.mxu0 %v358
    %405 = vmatpush.bf16.msra.mxu0 %v357
    %406 = vmatpush.bf16.msra.mxu0 %v356
    %407 = vmatmul.bf16.gmra.mxu0 %v245
    %v408 = vpop.f32.mrf.mxu0
    %v409 = vadd.f32 %v390, %v408
    %v410 = vpop.f32.mrf.mxu0
    %v411 = vadd.f32 %v392, %v410
    %412 = vmatmul.bf16.gmra.mxu0 %v247
    %v413 = vpop.f32.mrf.mxu0
    %v414 = vadd.f32 %v395, %v413
    %v415 = vpop.f32.mrf.mxu0
    %v416 = vadd.f32 %v397, %v415
    %417 = vdwg.mxu0
    %v418 = vmax.f32 %v409, 0.0
    %v419 = vmax.f32 %v411, 0.0
    %v420 = vmax.f32 %v414, 0.0
    %v421 = vmax.f32 %v416, 0.0
    %v422 = vpack.c.bf16 %v419, %v418
    %v423 = vpack.c.bf16 %v421, %v420
    %v424 = vld [vmem:[%s6] sm:$0xf]
    %v425 = vld [vmem:[%s6 + $0x4] sm:$0xf]
    %v426 = vld [vmem:[%s6 + $0x8] sm:$0xf]
    %v427 = vld [vmem:[%s6 + $0xc] sm:$0xf]
    %v428 = vld [vmem:[%s6 + $0x10] sm:$0xf]
    %v429 = vld [vmem:[%s6 + $0x14] sm:$0xf]
    %v430 = vld [vmem:[%s6 + $0x18] sm:$0xf]
    %v431 = vld [vmem:[%s6 + $0x1c] sm:$0xf]
    %v432 = vld [vmem:[%s6 + $0x20] sm:$0xf]
    %v433 = vld [vmem:[%s6 + $0x24] sm:$0xf]
    %v434 = vld [vmem:[%s6 + $0x28] sm:$0xf]
    %v435 = vld [vmem:[%s6 + $0x2c] sm:$0xf]
    %v436 = vld [vmem:[%s6 + $0x30] sm:$0xf]
    %v437 = vld [vmem:[%s6 + $0x34] sm:$0xf]
    %v438 = vld [vmem:[%s6 + $0x38] sm:$0xf]
    %v439 = vld [vmem:[%s6 + $0x3c] sm:$0xf]
    %v440 = vld [vmem:[%s7] sm:$0x1]
    %v442 = vperm.slane %v440, 0
    %v460 = vunpack.c.l.b16 %v424
    %v461 = vunpack.c.l.b16 %v425
    %v462 = vunpack.c.l.b16 %v426
    %v463 = vunpack.c.l.b16 %v427
    %v464 = vunpack.c.l.b16 %v428
    %v465 = vunpack.c.l.b16 %v429
    %v466 = vunpack.c.l.b16 %v430
    %v467 = vunpack.c.l.b16 %v431
    %v468 = vunpack.c.l.b16 %v432
    %v469 = vunpack.c.l.b16 %v433
    %v470 = vunpack.c.l.b16 %v434
    %v471 = vunpack.c.l.b16 %v435
    %v472 = vunpack.c.l.b16 %v436
    %v473 = vunpack.c.l.b16 %v437
    %v474 = vunpack.c.l.b16 %v438
    %v475 = vunpack.c.l.b16 %v439
    %v476 = vpack.c.b16 %v461, %v460
    %v477 = vpack.c.b16 %v463, %v462
    %v478 = vpack.c.b16 %v465, %v464
    %v479 = vpack.c.b16 %v467, %v466
    %v480 = vpack.c.b16 %v469, %v468
    %v481 = vpack.c.b16 %v471, %v470
    %v482 = vpack.c.b16 %v473, %v472
    %v483 = vpack.c.b16 %v475, %v474
    %492 = vmatpush.bf16.msra.mxu0 %v483
    %493 = vmatpush.bf16.msra.mxu0 %v482
    %494 = vmatpush.bf16.msra.mxu0 %v481
    %495 = vmatpush.bf16.msra.mxu0 %v480
    %496 = vmatpush.bf16.msra.mxu0 %v479
    %497 = vmatpush.bf16.msra.mxu0 %v478
    %498 = vmatpush.bf16.msra.mxu0 %v477
    %499 = vmatpush.bf16.msra.mxu0 %v476
    %500 = vmatmul.bf16.gmra.mxu0 %v422
    %v501 = vpop.f32.mrf.mxu0
    %v502 = vadd.f32 %v442, %v501
    %v503 = vpop.f32.mrf.mxu0
    %v504 = vadd.f32 %v442, %v503
    %505 = vmatmul.bf16.gmra.mxu0 %v423
    %v506 = vpop.f32.mrf.mxu0
    %v507 = vadd.f32 %v442, %v506
    %v508 = vpop.f32.mrf.mxu0
    %v509 = vadd.f32 %v442, %v508
    %510 = vdwg.mxu0
    %v511 = vmax.f32 %v502, 0.0
    %v512 = vmax.f32 %v504, 0.0
    %v513 = vmax.f32 %v507, 0.0
    %v514 = vmax.f32 %v509, 0.0
    %v515 = vsub.f32 %v511, %v513
    %v516 = vsub.f32 %v512, %v514
    %v517 = vpack.c.bf16 %v516, %v515
    %v518 = vld [vmem:[%s8] sm:$0xf]
    %v519 = vld [vmem:[%s8 + $0x4] sm:$0xf]
    %v520 = vld [vmem:[%s8 + $0x8] sm:$0xf]
    %v521 = vld [vmem:[%s8 + $0xc] sm:$0xf]
    %v522 = vld [vmem:[%s8 + $0x10] sm:$0xf]
    %v523 = vld [vmem:[%s8 + $0x14] sm:$0xf]
    %v524 = vld [vmem:[%s8 + $0x18] sm:$0xf]
    %v525 = vld [vmem:[%s8 + $0x1c] sm:$0xf]
    %v526 = vld [vmem:[%s9] sm:$0x1]
    %v528 = vperm.slane %v526, 0
    %v538 = vunpack.c.l.b16 %v518
    %v539 = vunpack.c.l.b16 %v519
    %v540 = vunpack.c.l.b16 %v520
    %v541 = vunpack.c.l.b16 %v521
    %v542 = vunpack.c.l.b16 %v522
    %v543 = vunpack.c.l.b16 %v523
    %v544 = vunpack.c.l.b16 %v524
    %v545 = vunpack.c.l.b16 %v525
    %v546 = vpack.c.b16 %v539, %v538
    %v547 = vpack.c.b16 %v541, %v540
    %v548 = vpack.c.b16 %v543, %v542
    %v549 = vpack.c.b16 %v545, %v544
    %v555 = vsel %vm191, %v517, 0
    %557 = vmatpush.bf16.msra.mxu0 0
    %558 = vmatpush.bf16.msra.mxu0 0
    %559 = vmatpush.bf16.msra.mxu0 0
    %560 = vmatpush.bf16.msra.mxu0 0
    %561 = vmatpush.bf16.msra.mxu0 %v549
    %562 = vmatpush.bf16.msra.mxu0 %v548
    %563 = vmatpush.bf16.msra.mxu0 %v547
    %564 = vmatpush.bf16.msra.mxu0 %v546
    %565 = vmatmul.bf16.gmra.mxu0 %v555
    %v566 = vpop.f32.mrf.mxu0
    %v567 = vadd.f32 %v528, %v566
    %v568 = vpop.f32.mrf.mxu0
    %v569 = vadd.f32 %v528, %v568
    %570 = vdwg.mxu0
    %v571 = vmax.f32 %v567, 0.0
    %v572 = vmax.f32 %v569, 0.0
    %v573 = vpack.c.bf16 %v572, %v571
    %v574 = vld [vmem:[#allocation10] sm:$0xf]
    %v575 = vld [vmem:[#allocation10 + $0x4] sm:$0xf]
    %v576 = vld [vmem:[#allocation10 + $0x8] sm:$0xf]
    %v577 = vld [vmem:[#allocation10 + $0xc] sm:$0xf]
    %v578 = vld [vmem:[#allocation10 + $0x10] sm:$0xf]
    %v579 = vld [vmem:[#allocation10 + $0x14] sm:$0xf]
    %v580 = vld [vmem:[#allocation10 + $0x18] sm:$0xf]
    %v581 = vld [vmem:[#allocation10 + $0x1c] sm:$0xf]
    %v582 = vld [vmem:[%s11] sm:$0x1]
    %v584 = vperm.slane %v582, 0
    %v594 = vunpack.c.l.b16 %v574
    %v595 = vunpack.c.l.b16 %v575
    %v596 = vunpack.c.l.b16 %v576
    %v597 = vunpack.c.l.b16 %v577
    %v598 = vunpack.c.l.b16 %v578
    %v599 = vunpack.c.l.b16 %v579
    %v600 = vunpack.c.l.b16 %v580
    %v601 = vunpack.c.l.b16 %v581
    %v602 = vpack.c.b16 %v595, %v594
    %v603 = vpack.c.b16 %v597, %v596
    %v604 = vpack.c.b16 %v599, %v598
    %v605 = vpack.c.b16 %v601, %v600
    %v611 = vsel %vm191, %v573, 0
    %613 = vmatpush.bf16.msra.mxu0 0
    %614 = vmatpush.bf16.msra.mxu0 0
    %615 = vmatpush.bf16.msra.mxu0 0
    %616 = vmatpush.bf16.msra.mxu0 0
    %617 = vmatpush.bf16.msra.mxu0 %v605
    %618 = vmatpush.bf16.msra.mxu0 %v604
    %619 = vmatpush.bf16.msra.mxu0 %v603
    %620 = vmatpush.bf16.msra.mxu0 %v602
    %621 = vmatmul.bf16.gmra.mxu0 %v611
    %v622 = vpop.f32.mrf.mxu0
    %v623 = vadd.f32 %v584, %v622
    %v624 = vpop.f32.mrf.mxu0
    %v625 = vadd.f32 %v584, %v624
    %626 = vdwg.mxu0
    %627 = vst [vmem:[#allocation11] sm:$0xff] %v623
    %628 = vst [vmem:[#allocation11 + $0x8] sm:$0xff] %v625
    // Predicated region
    $region70: #{tpu_custom_call.1} parent=1 // pred_check
      _
    $region71: #{tpu_custom_call.1} parent=1 // pred_check_branch
      %630 = sbr.rel (0) target = $region73
    $region72: #{tpu_custom_call.1} parent=1 // pred_region
      %632 = vsyncadd [#allocation4], 0
      %s633 = sshll.u32 [#allocation11], 4
      %s634 = int_to_ptr.vmem [resolvable:$true] %s633
      %s635 = sshll.u32 %s12, 4
      %s636 = int_to_ptr.hbm [resolvable:$true] %s635
      %641 = dma.vmem_to_hbm [thread:$0]  %s634, 256, %s636, [#allocation4], 128, 128, 8
    $region73: #{tpu_custom_call.1} parent=1 // pred_fallthru
      _
    // Predicated region
    $region74: #{tpu_custom_call.1} parent=1 // pred_check
      _
    $region75: #{tpu_custom_call.1} parent=1 // pred_check_branch
      %643 = sbr.rel (0) target = $region77
    $region76: #{tpu_custom_call.1} parent=1 // pred_region
      %645 = dma.done [#allocation4], 256
    $region77: #{tpu_custom_call.1} parent=1 // pred_fallthru
      _
    %646 = vsyncpa [#allocation3], 1
    %647 = vsyncpa [#allocation6], 1
    %648 = vsyncpa [#allocation9], 1
    %649 = vsyncpa [#allocation4], 1

</llo_original>
